<compile_context>
chip_gen: v6e
topology: v6e:2x2x1
jax: 0.10.0
libtpu: 0.0.40
codegen_flags: <defaults>
</compile_context>

<pallas_src>
from math import sqrt

import jax
import jax.numpy as jnp
from jax.experimental import pallas as pl
from jax.experimental.pallas import tpu as pltpu


def mlp_kernel(x_ref, w1_ref, b1_ref, w2_ref, b2_ref, w3_ref, b3_ref, o_ref):
    # x_ref:  (d_in, bb)  bf16   (batch on the lane axis)
    # wN_ref: (out, in)   bf16   (PyTorch layout, resident across grid steps)
    # bN_ref: (out, 1)    f32
    # Layer 1: Linear + ReLU  (bf16 MXU inputs, f32 accumulate / elementwise)
    h = jnp.dot(w1_ref[...], x_ref[...], preferred_element_type=jnp.float32)
    h = jnp.maximum(h + b1_ref[...], 0.0)
    # Dropout (eval mode) == identity.
    # Layer 2: Linear + ReLU  (h kept f32; small weight tile upcast is negligible)
    h = jnp.dot(w2_ref[...].astype(jnp.float32), h,
                preferred_element_type=jnp.float32)
    h = jnp.maximum(h + b2_ref[...], 0.0)
    # Output layer: Linear (no activation); result is (d_out, bb) -> lane-dense store.
    out = jnp.dot(w3_ref[...].astype(jnp.float32), h,
                  preferred_element_type=jnp.float32)
    out = out + b3_ref[...]
    o_ref[...] = out.astype(o_ref.dtype)


def mlp_forward(x, params, *, block_batch=512, compute_dtype=jnp.bfloat16):
    """x: [B, input_size] float32.  params: PyTorch-layout dict (wN: [out, in], bN: [out])."""
    w1, b1, w2, b2, w3, b3 = (
        params["w1"], params["b1"], params["w2"], params["b2"],
        params["w3"], params["b3"],
    )
    B, d_in = x.shape
    d_h1, d_h2, d_out = w1.shape[0], w2.shape[0], w3.shape[0]

    block_batch = min(block_batch, B)
    assert B % block_batch == 0, "pad the batch to a multiple of block_batch"
    if block_batch < B:
        # Partial tiles put block_batch on the lane axis of x / out -> must be x128.
        assert block_batch % 128 == 0, "block_batch must be a multiple of 128"
    grid = (B // block_batch,)

    # Layout plumbing (outside the kernel): batch -> lane axis, MXU storage dtype.
    x_t = x.T.astype(compute_dtype)                       # (d_in, B)
    w1c, w2c, w3c = (w.astype(compute_dtype) for w in (w1, w2, w3))
    b1c, b2c, b3c = (b.reshape(-1, 1).astype(jnp.float32) for b in (b1, b2, b3))

    def full(shape):
        return pl.BlockSpec(shape, lambda i: (0,) * len(shape))

    flops = 2 * B * (d_in * d_h1 + d_h1 * d_h2 + d_h2 * d_out)
    bytes_accessed = int(
        x_t.size * jnp.dtype(compute_dtype).itemsize
        + (w1c.size + w2c.size + w3c.size) * jnp.dtype(compute_dtype).itemsize
        + (b1c.size + b2c.size + b3c.size) * 4
        + B * d_out * jnp.dtype(x.dtype).itemsize
    )

    out_t = pl.pallas_call(
        mlp_kernel,
        out_shape=jax.ShapeDtypeStruct((d_out, B), x.dtype),
        grid_spec=pltpu.PrefetchScalarGridSpec(
            num_scalar_prefetch=0,
            grid=grid,
            in_specs=[
                pl.BlockSpec((d_in, block_batch), lambda i: (0, i)),  # x.T tile
                full((d_h1, d_in)),   # w1 (resident)
                full((d_h1, 1)),      # b1
                full((d_h2, d_h1)),   # w2
                full((d_h2, 1)),      # b2
                full((d_out, d_h2)),  # w3
                full((d_out, 1)),     # b3
            ],
            out_specs=pl.BlockSpec((d_out, block_batch), lambda i: (0, i)),
        ),
        compiler_params=pltpu.CompilerParams(
            # Parallel batch axis: lets v7x shard batch tiles across its 2 TensorCores.
            dimension_semantics=("parallel",),
        ),
        cost_estimate=pl.CostEstimate(
            flops=flops, transcendentals=0, bytes_accessed=bytes_accessed),
    )(x_t, w1c, b1c, w2c, b2c, w3c, b3c)

    return out_t.T  # back to [batch, d_out]


def init_linear_params(key, in_dim, out_dim):
    """PyTorch nn.Linear default init: U(-1/sqrt(in_dim), 1/sqrt(in_dim)), [out, in] layout."""
    kw, kb = jax.random.split(key)
    bound = 1.0 / sqrt(in_dim)
    w = jax.random.uniform(kw, (out_dim, in_dim), jnp.float32, -bound, bound)
    b = jax.random.uniform(kb, (out_dim,), jnp.float32, -bound, bound)
    return w, b


def reference_forward(x, params, compute_dtype=jnp.bfloat16):
    """Pure-JAX reference mirroring the kernel's dtype handling (bf16-rounded x/W, f32 math)."""
    rd = lambda a: a.astype(compute_dtype).astype(jnp.float32)
    h = jnp.maximum(rd(x) @ rd(params["w1"]).T + params["b1"], 0.0)
    h = jnp.maximum(h @ rd(params["w2"]).T + params["b2"], 0.0)
    return h @ rd(params["w3"]).T + params["b3"]


if __name__ == "__main__":
    # MLPModule(hidden_sizes=[32, 32], input_size=16, dropout_rate=0.1, output_size=1)
    input_size = 16
    hidden_sizes = [32, 32]
    output_size = 1
    batch = 1024          # two 512-row lane-dense tiles -> grid=(2,)

    key = jax.random.PRNGKey(0)
    k_x, k1, k2, k3 = jax.random.split(key, 4)

    w1, b1 = init_linear_params(k1, input_size, hidden_sizes[0])
    w2, b2 = init_linear_params(k2, hidden_sizes[0], hidden_sizes[1])
    w3, b3 = init_linear_params(k3, hidden_sizes[1], output_size)
    params = dict(w1=w1, b1=b1, w2=w2, b2=b2, w3=w3, b3=b3)

    x = jax.random.normal(k_x, (batch, input_size), jnp.float32)

    out = jax.block_until_ready(mlp_forward(x, params, block_batch=512))

    ref = reference_forward(x, params)
    assert out.shape == (batch, output_size)
    assert jnp.allclose(out, ref, atol=1e-4, rtol=1e-3), \
        f"mismatch vs. reference, max abs diff {float(jnp.max(jnp.abs(out - ref)))}"

    print("KERNEL_OK")
</pallas_src>

<mosaic_0001>
module attributes {stable_mosaic.version = 11 : i64} {
  func.func @mlp_kernel(%arg0: i32, %arg1: memref<16x512xbf16, #tpu.memory_space<vmem>>, %arg2: memref<32x16xbf16, #tpu.memory_space<vmem>>, %arg3: memref<32x1xf32, #tpu.memory_space<vmem>>, %arg4: memref<32x32xbf16, #tpu.memory_space<vmem>>, %arg5: memref<32x1xf32, #tpu.memory_space<vmem>>, %arg6: memref<1x32xbf16, #tpu.memory_space<vmem>>, %arg7: memref<1x1xf32, #tpu.memory_space<vmem>>, %arg8: memref<1x512xf32, #tpu.memory_space<vmem>>) attributes {dimension_semantics = [#tpu.dimension_semantics<parallel>], iteration_bounds = array<i64: 2>, scalar_prefetch = 0 : i64, scratch_operands = 0 : i64, tpu.core_type = #tpu.core_type<tc>, window_params = [{transform_indices = @transform_0, window_bounds = array<i64: 16, 512>}, {pipeline_mode = #tpu.pipeline_mode<synchronous>, transform_indices = @transform_1, window_bounds = array<i64: 32, 16>}, {pipeline_mode = #tpu.pipeline_mode<synchronous>, transform_indices = @transform_2, window_bounds = array<i64: 32, 1>}, {pipeline_mode = #tpu.pipeline_mode<synchronous>, transform_indices = @transform_3, window_bounds = array<i64: 32, 32>}, {pipeline_mode = #tpu.pipeline_mode<synchronous>, transform_indices = @transform_4, window_bounds = array<i64: 32, 1>}, {pipeline_mode = #tpu.pipeline_mode<synchronous>, transform_indices = @transform_5, window_bounds = array<i64: 1, 32>}, {pipeline_mode = #tpu.pipeline_mode<synchronous>, transform_indices = @transform_6, window_bounds = array<i64: 1, 1>}, {transform_indices = @transform_7, window_bounds = array<i64: 1, 512>}]} {
    %c0 = arith.constant 0 : index
    %c0_0 = arith.constant 0 : index
    %0 = vector.load %arg2[%c0, %c0_0] : memref<32x16xbf16, #tpu.memory_space<vmem>>, vector<32x16xbf16>
    %c0_1 = arith.constant 0 : index
    %c0_2 = arith.constant 0 : index
    %1 = vector.load %arg1[%c0_1, %c0_2] : memref<16x512xbf16, #tpu.memory_space<vmem>>, vector<16x512xbf16>
    %cst = arith.constant dense<0.000000e+00> : vector<32x512xf32>
    %2 = tpu.matmul %0, %1, %cst {dimension_numbers = #tpu.dot_dimension_numbers<[1], [0], [0], [1], [0, 0, 1, 1], [], []>} : vector<32x16xbf16>, vector<16x512xbf16>, vector<32x512xf32> -> vector<32x512xf32>
    %c0_3 = arith.constant 0 : index
    %c0_4 = arith.constant 0 : index
    %3 = vector.load %arg3[%c0_3, %c0_4] : memref<32x1xf32, #tpu.memory_space<vmem>>, vector<32x1xf32>
    %4 = vector.broadcast %3 : vector<32x1xf32> to vector<32x512xf32>
    %5 = arith.addf %2, %4 : vector<32x512xf32>
    %cst_5 = arith.constant 0.000000e+00 : f32
    %6 = vector.broadcast %cst_5 : f32 to vector<32x512xf32>
    %7 = arith.maximumf %5, %6 : vector<32x512xf32>
    %c0_6 = arith.constant 0 : index
    %c0_7 = arith.constant 0 : index
    %8 = vector.load %arg4[%c0_6, %c0_7] : memref<32x32xbf16, #tpu.memory_space<vmem>>, vector<32x32xbf16>
    %9 = arith.extf %8 : vector<32x32xbf16> to vector<32x32xf32>
    %cst_8 = arith.constant dense<0.000000e+00> : vector<32x512xf32>
    %10 = tpu.matmul %9, %7, %cst_8 {dimension_numbers = #tpu.dot_dimension_numbers<[1], [0], [0], [1], [0, 0, 1, 1], [], []>} : vector<32x32xf32>, vector<32x512xf32>, vector<32x512xf32> -> vector<32x512xf32>
    %c0_9 = arith.constant 0 : index
    %c0_10 = arith.constant 0 : index
    %11 = vector.load %arg5[%c0_9, %c0_10] : memref<32x1xf32, #tpu.memory_space<vmem>>, vector<32x1xf32>
    %12 = vector.broadcast %11 : vector<32x1xf32> to vector<32x512xf32>
    %13 = arith.addf %10, %12 : vector<32x512xf32>
    %cst_11 = arith.constant 0.000000e+00 : f32
    %14 = vector.broadcast %cst_11 : f32 to vector<32x512xf32>
    %15 = arith.maximumf %13, %14 : vector<32x512xf32>
    %c0_12 = arith.constant 0 : index
    %c0_13 = arith.constant 0 : index
    %16 = vector.load %arg6[%c0_12, %c0_13] : memref<1x32xbf16, #tpu.memory_space<vmem>>, vector<1x32xbf16>
    %17 = arith.extf %16 : vector<1x32xbf16> to vector<1x32xf32>
    %cst_14 = arith.constant dense<0.000000e+00> : vector<1x512xf32>
    %18 = tpu.matmul %17, %15, %cst_14 {dimension_numbers = #tpu.dot_dimension_numbers<[1], [0], [0], [1], [0, 0, 1, 1], [], []>} : vector<1x32xf32>, vector<32x512xf32>, vector<1x512xf32> -> vector<1x512xf32>
    %c0_15 = arith.constant 0 : index
    %c0_16 = arith.constant 0 : index
    %19 = vector.load %arg7[%c0_15, %c0_16] : memref<1x1xf32, #tpu.memory_space<vmem>>, vector<1x1xf32>
    %20 = vector.broadcast %19 : vector<1x1xf32> to vector<1x512xf32>
    %21 = arith.addf %18, %20 : vector<1x512xf32>
    %c0_17 = arith.constant 0 : index
    %c0_18 = arith.constant 0 : index
    %22 = vector.load %arg8[%c0_17, %c0_18] : memref<1x512xf32, #tpu.memory_space<vmem>>, vector<1x512xf32>
    tpu.vector_store %arg8[%c0_17, %c0_18], %21 {strides = array<i32>} : memref<1x512xf32, #tpu.memory_space<vmem>>, vector<1x512xf32>,
    return
  }
  func.func @transform_0(%arg0: i32) -> (i32, i32) {
    %c0_i32 = arith.constant 0 : i32
    %c0_i32_0 = arith.constant 0 : i32
    return %c0_i32, %arg0 : i32, i32
  }
  func.func @transform_1(%arg0: i32) -> (i32, i32) {
    %c0_i32 = arith.constant 0 : i32
    %c0_i32_0 = arith.constant 0 : i32
    %c0_i32_1 = arith.constant 0 : i32
    return %c0_i32, %c0_i32_0 : i32, i32
  }
  func.func @transform_2(%arg0: i32) -> (i32, i32) {
    %c0_i32 = arith.constant 0 : i32
    %c0_i32_0 = arith.constant 0 : i32
    %c0_i32_1 = arith.constant 0 : i32
    return %c0_i32, %c0_i32_0 : i32, i32
  }
  func.func @transform_3(%arg0: i32) -> (i32, i32) {
    %c0_i32 = arith.constant 0 : i32
    %c0_i32_0 = arith.constant 0 : i32
    %c0_i32_1 = arith.constant 0 : i32
    return %c0_i32, %c0_i32_0 : i32, i32
  }
  func.func @transform_4(%arg0: i32) -> (i32, i32) {
    %c0_i32 = arith.constant 0 : i32
    %c0_i32_0 = arith.constant 0 : i32
    %c0_i32_1 = arith.constant 0 : i32
    return %c0_i32, %c0_i32_0 : i32, i32
  }
  func.func @transform_5(%arg0: i32) -> (i32, i32) {
    %c0_i32 = arith.constant 0 : i32
    %c0_i32_0 = arith.constant 0 : i32
    %c0_i32_1 = arith.constant 0 : i32
    return %c0_i32, %c0_i32_0 : i32, i32
  }
  func.func @transform_6(%arg0: i32) -> (i32, i32) {
    %c0_i32 = arith.constant 0 : i32
    %c0_i32_0 = arith.constant 0 : i32
    %c0_i32_1 = arith.constant 0 : i32
    return %c0_i32, %c0_i32_0 : i32, i32
  }
  func.func @transform_7(%arg0: i32) -> (i32, i32) {
    %c0_i32 = arith.constant 0 : i32
    %c0_i32_0 = arith.constant 0 : i32
    return %c0_i32, %arg0 : i32, i32
  }
}

</mosaic_0001>

<llo_original>
// kernel: tpu_custom_call.1
$region0: #{tpu_custom_call.1}
  #allocation0 [shape = 'u32[]', space=smem, size = 0x4, offset = 0x4, fixed_abs, tag = 'smem constant byte address 0x4 - core index']
  #allocation1 [shape = 'u32[144,128]{1,0:T(1,128)}', space=vmem, size = 0x12000, scoped, tag = 'internal scratch']
  #allocation2 [shape = 'f32[1,1]{1,0:T(1,128)S(1)}', space=vmem, size = 0x200, scoped, tag = 'scoped memory for tpu_custom_call.1']
  %s0 = inlined_call_operand.vmem [shape: bf16[16,1024], index: 0, kind: input, shape index: {}]
  %s1 = inlined_call_operand.vmem [shape: bf16[32,16], index: 1, kind: input, shape index: {}]
  %s2 = inlined_call_operand.vmem [shape: f32[32,1], index: 2, kind: input, shape index: {}]
  %s3 = inlined_call_operand.vmem [shape: bf16[32,32], index: 3, kind: input, shape index: {}]
  %s4 = inlined_call_operand.vmem [shape: f32[32,1], index: 4, kind: input, shape index: {}]
  %s5 = inlined_call_operand.vmem [shape: bf16[1,32], index: 5, kind: input, shape index: {}]
  %s6 = inlined_call_operand.<no memory space> [shape: f32[1,1], index: 6, kind: input, shape index: {}]
  %s7 = inlined_call_operand.hbm [shape: f32[1,1024], index: 7, kind: output, shape index: {}]
  %s8 = sld [smem:[#allocation0]]
  $region84: #{tpu_custom_call.1} parent=0
    _
  %s10 = ssub.s32 1, %s8
  %s11 = scalar_select 0, %s10, %s8
  %v12 = vstv %s6
  %13 = vst [vmem:[#allocation2] sm:$0x1] %v12
  $region1: #{tpu_custom_call.1} parent=0
    #allocation3 [shape = 'u8[32768]{0}', space=vmem, size = 0x8000, scoped, tag = 'input window, operand 0']
    #allocation4 [shape = 'u8[4096]{0}', space=vmem, size = 0x1000, scoped, tag = 'output window, operand 0']
    #allocation5 [shape = 's32[2]{0}', space=sflag, size = 0x8, scoped, tag = 'scoped memory for tpu_custom_call.1']
    %14 = vsyncpa [#allocation5], 0
    %s15 = scalar_lea.sflag [#allocation5], 1
    %16 = vsyncpa %s15, 0
    loop: start=0, step=1, limit=4
    $region2: #{tpu_custom_call.1} parent=1 // loop_pre_header
      _
    $region3: #{tpu_custom_call.1} parent=1 // loop_header
      %s18 = sphi 0, %s22
      %p19 = scmp.ge.s32.totalorder %s18, 4
      %s28 = sphi 0, %s30
      %s31 = sphi 0, %s28
      %s32 = sphi 0, %s31
      %s48 = sphi 0, %s32
      %s52 = sphi 0, %s52
      %s54 = sphi 0, %s52
      %s55 = sphi 0, %s54
      %s69 = sphi 0, %s55
      %s73 = sphi 0, %s73
      %s75 = sphi 0, %s73
      %s76 = sphi 0, %s75
      %s90 = sphi 0, %s76
      %s94 = sphi 0, %s94
      %s96 = sphi 0, %s94
      %s97 = sphi 0, %s96
      %s111 = sphi 0, %s97
      %s115 = sphi 0, %s115
      %s117 = sphi 0, %s115
      %s118 = sphi 0, %s117
      %s132 = sphi 0, %s118
      %s136 = sphi 0, %s136
      %s138 = sphi 0, %s136
      %s139 = sphi 0, %s138
      %s153 = sphi 0, %s139
      %s157 = sphi 0, %s157
      %s159 = sphi 0, %s157
      %s160 = sphi 0, %s159
      %s174 = sphi 0, %s160
      %s180 = sphi 0, %s182
      %s183 = sphi 0, %s180
      %s184 = sphi 0, %s183
      %s200 = sphi 0, %s184
    $region4: #{tpu_custom_call.1} parent=1 // loop_header_branch
      %21 = sbr.rel (%p19) target = $region8
    $region5: #{tpu_custom_call.1} parent=1 // loop_body
      %s23 = ssub.s32 %s18, 1
      %s24 = ssub.s32 %s18, 2
      %s25 = sadd.s32 %s18, 1
      %s26 = ssub.s32 %s18, %s25
      %p27 = scmp.eq.s32.totalorder %s26, 0
      %s29 = sadd.s32 %s28, 1
      %s30 = scalar_select %p27, %s28, %s29
      %p33 = pneg %p27
      %p34 = scmp.eq.s32.totalorder %s18, 1
      %p35 = por %p33, %p34
      %p36 = scmp.ne.s32.totalorder %s28, %s31
      %p37 = scmp.eq.s32.totalorder %s18, 0
      %p38 = por %p36, %p37
      %p39 = scmp.ne.s32.totalorder %s28, %s31
      %p40 = scmp.eq.s32.totalorder %s23, 1
      %p41 = por %p39, %p40
      %p42 = scmp.ne.s32.totalorder %s31, %s32
      %p43 = scmp.eq.s32.totalorder %s23, 0
      %p44 = por %p42, %p43
      %p45 = scmp.ne.s32.totalorder %s31, %s32
      %p46 = scmp.eq.s32.totalorder %s24, 1
      %p47 = por %p45, %p46
      %p49 = scmp.ne.s32.totalorder %s32, %s48
      %p50 = scmp.eq.s32.totalorder %s24, 0
      %p51 = por %p49, %p50
      %s53 = sadd.s32 %s52, 1
      %p56 = scmp.eq.s32.totalorder %s18, 1
      %p57 = scmp.ne.s32.totalorder %s52, %s54
      %p58 = scmp.eq.s32.totalorder %s18, 0
      %p59 = por %p57, %p58
      %p60 = scmp.ne.s32.totalorder %s52, %s54
      %p61 = scmp.eq.s32.totalorder %s23, 1
      %p62 = por %p60, %p61
      %p63 = scmp.ne.s32.totalorder %s54, %s55
      %p64 = scmp.eq.s32.totalorder %s23, 0
      %p65 = por %p63, %p64
      %p66 = scmp.ne.s32.totalorder %s54, %s55
      %p67 = scmp.eq.s32.totalorder %s24, 1
      %p68 = por %p66, %p67
      %p70 = scmp.ne.s32.totalorder %s55, %s69
      %p71 = scmp.eq.s32.totalorder %s24, 0
      %p72 = por %p70, %p71
      %s74 = sadd.s32 %s73, 1
      %p77 = scmp.eq.s32.totalorder %s18, 1
      %p78 = scmp.ne.s32.totalorder %s73, %s75
      %p79 = scmp.eq.s32.totalorder %s18, 0
      %p80 = por %p78, %p79
      %p81 = scmp.ne.s32.totalorder %s73, %s75
      %p82 = scmp.eq.s32.totalorder %s23, 1
      %p83 = por %p81, %p82
      %p84 = scmp.ne.s32.totalorder %s75, %s76
      %p85 = scmp.eq.s32.totalorder %s23, 0
      %p86 = por %p84, %p85
      %p87 = scmp.ne.s32.totalorder %s75, %s76
      %p88 = scmp.eq.s32.totalorder %s24, 1
      %p89 = por %p87, %p88
      %p91 = scmp.ne.s32.totalorder %s76, %s90
      %p92 = scmp.eq.s32.totalorder %s24, 0
      %p93 = por %p91, %p92
      %s95 = sadd.s32 %s94, 1
      %p98 = scmp.eq.s32.totalorder %s18, 1
      %p99 = scmp.ne.s32.totalorder %s94, %s96
      %p100 = scmp.eq.s32.totalorder %s18, 0
      %p101 = por %p99, %p100
      %p102 = scmp.ne.s32.totalorder %s94, %s96
      %p103 = scmp.eq.s32.totalorder %s23, 1
      %p104 = por %p102, %p103
      %p105 = scmp.ne.s32.totalorder %s96, %s97
      %p106 = scmp.eq.s32.totalorder %s23, 0
      %p107 = por %p105, %p106
      %p108 = scmp.ne.s32.totalorder %s96, %s97
      %p109 = scmp.eq.s32.totalorder %s24, 1
      %p110 = por %p108, %p109
      %p112 = scmp.ne.s32.totalorder %s97, %s111
      %p113 = scmp.eq.s32.totalorder %s24, 0
      %p114 = por %p112, %p113
      %s116 = sadd.s32 %s115, 1
      %p119 = scmp.eq.s32.totalorder %s18, 1
      %p120 = scmp.ne.s32.totalorder %s115, %s117
      %p121 = scmp.eq.s32.totalorder %s18, 0
      %p122 = por %p120, %p121
      %p123 = scmp.ne.s32.totalorder %s115, %s117
      %p124 = scmp.eq.s32.totalorder %s23, 1
      %p125 = por %p123, %p124
      %p126 = scmp.ne.s32.totalorder %s117, %s118
      %p127 = scmp.eq.s32.totalorder %s23, 0
      %p128 = por %p126, %p127
      %p129 = scmp.ne.s32.totalorder %s117, %s118
      %p130 = scmp.eq.s32.totalorder %s24, 1
      %p131 = por %p129, %p130
      %p133 = scmp.ne.s32.totalorder %s118, %s132
      %p134 = scmp.eq.s32.totalorder %s24, 0
      %p135 = por %p133, %p134
      %s137 = sadd.s32 %s136, 1
      %p140 = scmp.eq.s32.totalorder %s18, 1
      %p141 = scmp.ne.s32.totalorder %s136, %s138
      %p142 = scmp.eq.s32.totalorder %s18, 0
      %p143 = por %p141, %p142
      %p144 = scmp.ne.s32.totalorder %s136, %s138
      %p145 = scmp.eq.s32.totalorder %s23, 1
      %p146 = por %p144, %p145
      %p147 = scmp.ne.s32.totalorder %s138, %s139
      %p148 = scmp.eq.s32.totalorder %s23, 0
      %p149 = por %p147, %p148
      %p150 = scmp.ne.s32.totalorder %s138, %s139
      %p151 = scmp.eq.s32.totalorder %s24, 1
      %p152 = por %p150, %p151
      %p154 = scmp.ne.s32.totalorder %s139, %s153
      %p155 = scmp.eq.s32.totalorder %s24, 0
      %p156 = por %p154, %p155
      %s158 = sadd.s32 %s157, 1
      %p161 = scmp.eq.s32.totalorder %s18, 1
      %p162 = scmp.ne.s32.totalorder %s157, %s159
      %p163 = scmp.eq.s32.totalorder %s18, 0
      %p164 = por %p162, %p163
      %p165 = scmp.ne.s32.totalorder %s157, %s159
      %p166 = scmp.eq.s32.totalorder %s23, 1
      %p167 = por %p165, %p166
      %p168 = scmp.ne.s32.totalorder %s159, %s160
      %p169 = scmp.eq.s32.totalorder %s23, 0
      %p170 = por %p168, %p169
      %p171 = scmp.ne.s32.totalorder %s159, %s160
      %p172 = scmp.eq.s32.totalorder %s24, 1
      %p173 = por %p171, %p172
      %p175 = scmp.ne.s32.totalorder %s160, %s174
      %p176 = scmp.eq.s32.totalorder %s24, 0
      %p177 = por %p175, %p176
      %s178 = ssub.s32 %s18, %s25
      %p179 = scmp.eq.s32.totalorder %s178, 0
      %s181 = sadd.s32 %s180, 1
      %s182 = scalar_select %p179, %s180, %s181
      %p185 = pneg %p179
      %p186 = scmp.eq.s32.totalorder %s18, 1
      %p187 = por %p185, %p186
      %p188 = scmp.ne.s32.totalorder %s180, %s183
      %p189 = scmp.eq.s32.totalorder %s18, 0
      %p190 = por %p188, %p189
      %p191 = scmp.ne.s32.totalorder %s180, %s183
      %p192 = scmp.eq.s32.totalorder %s23, 1
      %p193 = por %p191, %p192
      %p194 = scmp.ne.s32.totalorder %s183, %s184
      %p195 = scmp.eq.s32.totalorder %s23, 0
      %p196 = por %p194, %p195
      %p197 = scmp.ne.s32.totalorder %s183, %s184
      %p198 = scmp.eq.s32.totalorder %s24, 1
      %p199 = por %p197, %p198
      %p201 = scmp.ne.s32.totalorder %s184, %s200
      %p202 = scmp.eq.s32.totalorder %s24, 0
      %p203 = por %p201, %p202
      %p204 = scmp.le.s32.totalorder 1, %s18
      %p205 = scmp.lt.s32.totalorder %s18, 3
      %p206 = pnand %p204, %p205
      %p207 = pneg %p206
      // Predicated region
      $region9: #{tpu_custom_call.1} parent=5 // pred_check
        _
      $region10: #{tpu_custom_call.1} parent=5 // pred_check_branch
        %209 = sbr.rel (%p206) target = $region12
      $region11: #{tpu_custom_call.1} parent=5 // pred_region
        %s210 = ssub.s32 %s18, 1
        // Predicated region
        $region13: #{tpu_custom_call.1} parent=11 // pred_check
          %p211 = pneg %p65
        $region14: #{tpu_custom_call.1} parent=11 // pred_check_branch
          %213 = sbr.rel (%p211) target = $region16
        $region15: #{tpu_custom_call.1} parent=11 // pred_region
          _
        $region16: #{tpu_custom_call.1} parent=11 // pred_fallthru
          _
        // Predicated region
        $region17: #{tpu_custom_call.1} parent=11 // pred_check
          %p214 = pneg %p86
        $region18: #{tpu_custom_call.1} parent=11 // pred_check_branch
          %216 = sbr.rel (%p214) target = $region20
        $region19: #{tpu_custom_call.1} parent=11 // pred_region
          _
        $region20: #{tpu_custom_call.1} parent=11 // pred_fallthru
          _
        // Predicated region
        $region21: #{tpu_custom_call.1} parent=11 // pred_check
          %p217 = pneg %p107
        $region22: #{tpu_custom_call.1} parent=11 // pred_check_branch
          %219 = sbr.rel (%p217) target = $region24
        $region23: #{tpu_custom_call.1} parent=11 // pred_region
          _
        $region24: #{tpu_custom_call.1} parent=11 // pred_fallthru
          _
        // Predicated region
        $region25: #{tpu_custom_call.1} parent=11 // pred_check
          %p220 = pneg %p128
        $region26: #{tpu_custom_call.1} parent=11 // pred_check_branch
          %222 = sbr.rel (%p220) target = $region28
        $region27: #{tpu_custom_call.1} parent=11 // pred_region
          _
        $region28: #{tpu_custom_call.1} parent=11 // pred_fallthru
          _
        // Predicated region
        $region29: #{tpu_custom_call.1} parent=11 // pred_check
          %p223 = pneg %p149
        $region30: #{tpu_custom_call.1} parent=11 // pred_check_branch
          %225 = sbr.rel (%p223) target = $region32
        $region31: #{tpu_custom_call.1} parent=11 // pred_region
          _
        $region32: #{tpu_custom_call.1} parent=11 // pred_fallthru
          _
        // Predicated region
        $region33: #{tpu_custom_call.1} parent=11 // pred_check
          %p226 = pneg %p170
        $region34: #{tpu_custom_call.1} parent=11 // pred_check_branch
          %228 = sbr.rel (%p226) target = $region36
        $region35: #{tpu_custom_call.1} parent=11 // pred_region
          _
        $region36: #{tpu_custom_call.1} parent=11 // pred_fallthru
          _
      $region12: #{tpu_custom_call.1} parent=5 // pred_fallthru
        _
      %p229 = scmp.lt.s32.totalorder %s18, 2
      // Predicated region
      $region37: #{tpu_custom_call.1} parent=5 // pred_check
        %p230 = pneg %p229
      $region38: #{tpu_custom_call.1} parent=5 // pred_check_branch
        %232 = sbr.rel (%p230) target = $region40
      $region39: #{tpu_custom_call.1} parent=5 // pred_region
        // Predicated region
        $region41: #{tpu_custom_call.1} parent=39 // pred_check
          %p233 = pneg %p38
        $region42: #{tpu_custom_call.1} parent=39 // pred_check_branch
          %235 = sbr.rel (%p233) target = $region44
        $region43: #{tpu_custom_call.1} parent=39 // pred_region
          %s236 = sand.u32 %s28, 1
          %s237 = sand.u32 %s28, 1
          %s238 = smul.addr %s237, 32
          %s239 = scalar_lea.vmem [#allocation3], %s238
          %s240 = smul.u32 4, %s18
          %s241 = smul.addr %s240, 4
          %s242 = scalar_lea.vmem %s0, %s241
          // Predicated region
          $region45: #{tpu_custom_call.1} parent=43 // pred_check
            _
          $region46: #{tpu_custom_call.1} parent=43 // pred_check_branch
            %244 = sbr.rel (0) target = $region48
          $region47: #{tpu_custom_call.1} parent=43 // pred_region
            // Predicated region
            $region49: #{tpu_custom_call.1} parent=47 // pred_check
              _
            $region50: #{tpu_custom_call.1} parent=47 // pred_check_branch
              %246 = sbr.rel (0) target = $region52
            $region51: #{tpu_custom_call.1} parent=47 // pred_region
              loop: start=0, step=1, limit=1
              $region53: #{tpu_custom_call.1} parent=51 // loop_pre_header
                _
              $region54: #{tpu_custom_call.1} parent=51 // loop_header
                %s248 = sphi 0, %s252
                %p249 = scmp.ge.s32.totalorder %s248, 1
                %s253 = sphi %s242, %s242
                %s254 = sphi %s239, %s239
              $region55: #{tpu_custom_call.1} parent=51 // loop_header_branch
                %251 = sbr.rel (%p249) target = $region59
              $region56: #{tpu_custom_call.1} parent=51 // loop_body
                %v255 = vld [vmem:[%s253] sm:$0xff]
                %256 = vst [vmem:[%s254] sm:$0xff] %v255
                %v257 = vld [vmem:[%s253 + $0x8] sm:$0xff]
                %258 = vst [vmem:[%s254 + $0x8] sm:$0xff] %v257
                %v259 = vld [vmem:[%s253 + $0x20] sm:$0xff]
                %260 = vst [vmem:[%s254 + $0x10] sm:$0xff] %v259
                %v261 = vld [vmem:[%s253 + $0x28] sm:$0xff]
                %262 = vst [vmem:[%s254 + $0x18] sm:$0xff] %v261
              $region57: #{tpu_custom_call.1} parent=51 // loop_footer
                %s252 = sadd.s32 1, %s248
              $region58: #{tpu_custom_call.1} parent=51 // loop_footer_branch
                %247 = sbr.rel target = $region54
              $region59: #{tpu_custom_call.1} parent=51 // loop_exit
                _
            $region52: #{tpu_custom_call.1} parent=47 // pred_fallthru
              _
            // Predicated region
            $region60: #{tpu_custom_call.1} parent=47 // pred_check
              _
            $region61: #{tpu_custom_call.1} parent=47 // pred_check_branch
              %264 = sbr.rel target = $region63
            $region62: #{tpu_custom_call.1} parent=47 // pred_region
              _
            $region63: #{tpu_custom_call.1} parent=47 // pred_fallthru
              _
          $region48: #{tpu_custom_call.1} parent=43 // pred_fallthru
            _
          %265 = vnop
        $region44: #{tpu_custom_call.1} parent=39 // pred_fallthru
          _
      $region40: #{tpu_custom_call.1} parent=5 // pred_fallthru
        _
      %p266 = scmp.le.s32.totalorder 1, %s18
      %p267 = scmp.lt.s32.totalorder %s18, 3
      %p268 = pnand %p266, %p267
      %p269 = pneg %p268
      // Predicated region
      $region64: #{tpu_custom_call.1} parent=5 // pred_check
        _
      $region65: #{tpu_custom_call.1} parent=5 // pred_check_branch
        %271 = sbr.rel (%p268) target = $region67
      $region66: #{tpu_custom_call.1} parent=5 // pred_region
        %s272 = ssub.s32 %s18, 1
        %s273 = sand.u32 %s31, 1
        %s274 = sand.u32 %s31, 1
        %s275 = smul.addr %s274, 32
        %s276 = scalar_lea.vmem [#allocation3], %s275
        // Predicated region
        $region68: #{tpu_custom_call.1} parent=66 // pred_check
          %p277 = pneg %p44
        $region69: #{tpu_custom_call.1} parent=66 // pred_check_branch
          %279 = sbr.rel (%p277) target = $region71
        $region70: #{tpu_custom_call.1} parent=66 // pred_region
          _
        $region71: #{tpu_custom_call.1} parent=66 // pred_fallthru
          _
        %s280 = sand.u32 %s31, 1
        %s281 = sand.u32 %s31, 1
        %s282 = smul.addr %s281, 32
        %s283 = scalar_lea.vmem [#allocation3], %s282
        %p284 = pneg %p44
        %p285 = pneg %p41
        %p286 = pneg %p65
        %p287 = pneg %p62
        %p288 = pneg %p86
        %p289 = pneg %p83
        %p290 = pneg %p107
        %p291 = pneg %p104
        %p292 = pneg %p128
        %p293 = pneg %p125
        %p294 = pneg %p149
        %p295 = pneg %p146
        %p296 = pneg %p170
        %p297 = pneg %p167
        %p298 = pneg %p196
        %p299 = pneg %p193
        %s300 = sand.u32 %s183, 1
        %s301 = scalar_lea.sflag [#allocation5], %s300
        %s302 = sand.u32 %s183, 1
        %s303 = smul.addr %s302, 4
        %s304 = scalar_lea.vmem [#allocation4], %s303
        %s305 = smul.u32 4, %s23
        %s306 = smul.u32 4, %s23
        %v308 = vld [vmem:[%s1] sm:$0xf]
        %v309 = vld [vmem:[%s1 + $0x4] sm:$0xf]
        %v310 = vld [vmem:[%s1 + $0x8] sm:$0xf]
        %v311 = vld [vmem:[%s1 + $0xc] sm:$0xf]
        %v312 = vld [vmem:[%s276] sm:$0xff]
        %v313 = vld [vmem:[%s276 + $0x8] sm:$0xff]
        %v314 = vld [vmem:[%s276 + $0x10] sm:$0xff]
        %v315 = vld [vmem:[%s276 + $0x18] sm:$0xff]
        %v316 = vld [vmem:[%s2] sm:$0xff]
        %v317 = vld [vmem:[%s2 + $0x8] sm:$0xff]
        %v318 = vld [vmem:[%s2 + $0x10] sm:$0xff]
        %v319 = vld [vmem:[%s2 + $0x18] sm:$0xff]
        %321 = vset.pattern.permute.xlu0 0
        %322 = vperm.xlu0 %321, %v316
        %v323 = vpop.permute.xlu0 %322
        %326 = vset.pattern.permute.xlu0 0
        %327 = vperm.xlu0 %326, %v317
        %v328 = vpop.permute.xlu0 %327
        %331 = vset.pattern.permute.xlu0 0
        %332 = vperm.xlu0 %331, %v318
        %v333 = vpop.permute.xlu0 %332
        %336 = vset.pattern.permute.xlu0 0
        %337 = vperm.xlu0 %336, %v319
        %v338 = vpop.permute.xlu0 %337
        %v344 = vunpack.c.l.b16 %v308
        %v345 = vunpack.c.l.b16 %v309
        %v346 = vunpack.c.l.b16 %v310
        %v347 = vunpack.c.l.b16 %v311
        %v348 = vpack.c.b16 %v345, %v344
        %v349 = vpack.c.b16 %v347, %v346
        %v354 = vunpack.c.l.b16 %v312
        %v355 = vunpack.c.h.b16 %v312
        %v356 = vunpack.c.l.b16 %v313
        %v357 = vunpack.c.h.b16 %v313
        %v358 = vunpack.c.l.b16 %v314
        %v359 = vunpack.c.h.b16 %v314
        %v360 = vunpack.c.l.b16 %v315
        %v361 = vunpack.c.h.b16 %v315
        %v362 = vpack.c.b16 %v358, %v354
        %v363 = vpack.c.b16 %v359, %v355
        %v364 = vpack.c.b16 %v360, %v356
        %v365 = vpack.c.b16 %v361, %v357
        %vm370 = vcmask 130048
        %v372 = vsel %vm370, %v348, 0
        %v375 = vsel %vm370, %v349, 0
        %377 = vmatprep.subr.bf16.mxu0 0
        %378 = vmatpush1.bf16.msra.mxu0 0
        %379 = vmatprep.subr.bf16.mxu0 0
        %380 = vmatpush1.bf16.msra.mxu0 0
        %381 = vmatprep.subr.bf16.mxu0 0
        %382 = vmatpush1.bf16.msra.mxu0 0
        %383 = vmatprep.subr.bf16.mxu0 0
        %384 = vmatpush1.bf16.msra.mxu0 0
        %385 = vmatprep.subr.bf16.mxu0 0
        %386 = vmatpush1.bf16.msra.mxu0 0
        %387 = vmatprep.subr.bf16.mxu0 0
        %388 = vmatpush1.bf16.msra.mxu0 0
        %389 = vmatprep.subr.bf16.mxu0 0
        %390 = vmatpush1.bf16.msra.mxu0 0
        %391 = vmatprep.subr.bf16.mxu0 %v363
        %392 = vmatpush1.bf16.msra.mxu0 %v362
        %393 = vmatprep.subr.bf16.mxu0 0
        %394 = vmatpush2.bf16.msra.mxu0 0
        %395 = vmatprep.subr.bf16.mxu0 0
        %396 = vmatpush2.bf16.msra.mxu0 0
        %397 = vmatprep.subr.bf16.mxu0 0
        %398 = vmatpush2.bf16.msra.mxu0 0
        %399 = vmatprep.subr.bf16.mxu0 0
        %400 = vmatpush2.bf16.msra.mxu0 0
        %401 = vmatprep.subr.bf16.mxu0 0
        %402 = vmatpush2.bf16.msra.mxu0 0
        %403 = vmatprep.subr.bf16.mxu0 0
        %404 = vmatpush2.bf16.msra.mxu0 0
        %405 = vmatprep.subr.bf16.mxu0 0
        %406 = vmatpush2.bf16.msra.mxu0 0
        %407 = vmatprep.subr.bf16.mxu0 0
        %408 = vmatpush2.bf16.msra.mxu0 0
        %409 = vmatprep.mubr.bf16.mxu0 0
        %410 = vmatmul.mubr.bf16.gmra.mxu0 %v372
        %v411 = vpop.f32.mrf.mxu0
        %v412 = vadd.f32 %v323, %v411
        %v413 = vpop.f32.mrf.mxu0
        %v414 = vadd.f32 %v323, %v413
        %v415 = vpop.f32.mrf.mxu0
        %v416 = vadd.f32 %v328, %v415
        %v417 = vpop.f32.mrf.mxu0
        %v418 = vadd.f32 %v328, %v417
        %419 = vmatprep.mubr.bf16.mxu0 0
        %420 = vmatmul.mubr.bf16.gmra.mxu0 %v375
        %v421 = vpop.f32.mrf.mxu0
        %v422 = vadd.f32 %v333, %v421
        %v423 = vpop.f32.mrf.mxu0
        %v424 = vadd.f32 %v333, %v423
        %v425 = vpop.f32.mrf.mxu0
        %v426 = vadd.f32 %v338, %v425
        %v427 = vpop.f32.mrf.mxu0
        %v428 = vadd.f32 %v338, %v427
        %429 = vdwg.mxu0
        %430 = vmatprep.subr.bf16.mxu0 0
        %431 = vmatpush1.bf16.msra.mxu0 0
        %432 = vmatprep.subr.bf16.mxu0 0
        %433 = vmatpush1.bf16.msra.mxu0 0
        %434 = vmatprep.subr.bf16.mxu0 0
        %435 = vmatpush1.bf16.msra.mxu0 0
        %436 = vmatprep.subr.bf16.mxu0 0
        %437 = vmatpush1.bf16.msra.mxu0 0
        %438 = vmatprep.subr.bf16.mxu0 0
        %439 = vmatpush1.bf16.msra.mxu0 0
        %440 = vmatprep.subr.bf16.mxu0 0
        %441 = vmatpush1.bf16.msra.mxu0 0
        %442 = vmatprep.subr.bf16.mxu0 0
        %443 = vmatpush1.bf16.msra.mxu0 0
        %444 = vmatprep.subr.bf16.mxu0 %v365
        %445 = vmatpush1.bf16.msra.mxu0 %v364
        %446 = vmatprep.subr.bf16.mxu0 0
        %447 = vmatpush2.bf16.msra.mxu0 0
        %448 = vmatprep.subr.bf16.mxu0 0
        %449 = vmatpush2.bf16.msra.mxu0 0
        %450 = vmatprep.subr.bf16.mxu0 0
        %451 = vmatpush2.bf16.msra.mxu0 0
        %452 = vmatprep.subr.bf16.mxu0 0
        %453 = vmatpush2.bf16.msra.mxu0 0
        %454 = vmatprep.subr.bf16.mxu0 0
        %455 = vmatpush2.bf16.msra.mxu0 0
        %456 = vmatprep.subr.bf16.mxu0 0
        %457 = vmatpush2.bf16.msra.mxu0 0
        %458 = vmatprep.subr.bf16.mxu0 0
        %459 = vmatpush2.bf16.msra.mxu0 0
        %460 = vmatprep.subr.bf16.mxu0 0
        %461 = vmatpush2.bf16.msra.mxu0 0
        %462 = vmatprep.mubr.bf16.mxu0 0
        %463 = vmatmul.mubr.bf16.gmra.mxu0 %v372
        %v464 = vpop.f32.mrf.mxu0
        %v465 = vadd.f32 %v323, %v464
        %v466 = vpop.f32.mrf.mxu0
        %v467 = vadd.f32 %v323, %v466
        %v468 = vpop.f32.mrf.mxu0
        %v469 = vadd.f32 %v328, %v468
        %v470 = vpop.f32.mrf.mxu0
        %v471 = vadd.f32 %v328, %v470
        %472 = vmatprep.mubr.bf16.mxu0 0
        %473 = vmatmul.mubr.bf16.gmra.mxu0 %v375
        %v474 = vpop.f32.mrf.mxu0
        %v475 = vadd.f32 %v333, %v474
        %v476 = vpop.f32.mrf.mxu0
        %v477 = vadd.f32 %v333, %v476
        %v478 = vpop.f32.mrf.mxu0
        %v479 = vadd.f32 %v338, %v478
        %v480 = vpop.f32.mrf.mxu0
        %v481 = vadd.f32 %v338, %v480
        %482 = vdwg.mxu0
        %v483 = vmax.f32 %v412, 0.0
        %v484 = vmax.f32 %v414, 0.0
        %v485 = vmax.f32 %v465, 0.0
        %v486 = vmax.f32 %v467, 0.0
        %v487 = vmax.f32 %v416, 0.0
        %v488 = vmax.f32 %v418, 0.0
        %v489 = vmax.f32 %v469, 0.0
        %v490 = vmax.f32 %v471, 0.0
        %v491 = vmax.f32 %v422, 0.0
        %v492 = vmax.f32 %v424, 0.0
        %v493 = vmax.f32 %v475, 0.0
        %v494 = vmax.f32 %v477, 0.0
        %v495 = vmax.f32 %v426, 0.0
        %v496 = vmax.f32 %v428, 0.0
        %v497 = vmax.f32 %v479, 0.0
        %v498 = vmax.f32 %v481, 0.0
        %v499 = vld [vmem:[%s3] sm:$0xf]
        %v500 = vld [vmem:[%s3 + $0x4] sm:$0xf]
        %v501 = vld [vmem:[%s3 + $0x8] sm:$0xf]
        %v502 = vld [vmem:[%s3 + $0xc] sm:$0xf]
        %v503 = vunpack.c.l.bf16 %v499
        %v504 = vunpack.c.l.bf16 %v500
        %v505 = vunpack.c.l.bf16 %v501
        %v506 = vunpack.c.l.bf16 %v502
        %v507 = vld [vmem:[%s4] sm:$0xff]
        %v508 = vld [vmem:[%s4 + $0x8] sm:$0xff]
        %v509 = vld [vmem:[%s4 + $0x10] sm:$0xff]
        %v510 = vld [vmem:[%s4 + $0x18] sm:$0xff]
        %512 = vset.pattern.permute.xlu0 0
        %513 = vperm.xlu0 %512, %v507
        %v514 = vpop.permute.xlu0 %513
        %517 = vset.pattern.permute.xlu0 0
        %518 = vperm.xlu0 %517, %v508
        %v519 = vpop.permute.xlu0 %518
        %522 = vset.pattern.permute.xlu0 0
        %523 = vperm.xlu0 %522, %v509
        %v524 = vpop.permute.xlu0 %523
        %527 = vset.pattern.permute.xlu0 0
        %528 = vperm.xlu0 %527, %v510
        %v529 = vpop.permute.xlu0 %528
        %vm531 = vcmask 261120
        %v533 = vsel %vm531, %v503, 0
        %v536 = vsel %vm531, %v504, 0
        %v539 = vsel %vm531, %v505, 0
        %v542 = vsel %vm531, %v506, 0
        %544 = vmatprep.subr.mxu0 0.0
        %545 = vmatpush1.msra.mxu0 0.0
        %546 = vmatprep.subr.mxu0 0.0
        %547 = vmatpush1.msra.mxu0 0.0
        %548 = vmatprep.subr.mxu0 0.0
        %549 = vmatpush1.msra.mxu0 0.0
        %550 = vmatprep.subr.mxu0 0.0
        %551 = vmatpush1.msra.mxu0 0.0
        %552 = vmatprep.subr.mxu0 0.0
        %553 = vmatpush1.msra.mxu0 0.0
        %554 = vmatprep.subr.mxu0 0.0
        %555 = vmatpush1.msra.mxu0 0.0
        %556 = vmatprep.subr.mxu0 0.0
        %557 = vmatpush1.msra.mxu0 0.0
        %558 = vmatprep.subr.mxu0 0.0
        %559 = vmatpush1.msra.mxu0 0.0
        %560 = vmatprep.subr.mxu0 0.0
        %561 = vmatpush1.msra.mxu0 0.0
        %562 = vmatprep.subr.mxu0 0.0
        %563 = vmatpush1.msra.mxu0 0.0
        %564 = vmatprep.subr.mxu0 0.0
        %565 = vmatpush1.msra.mxu0 0.0
        %566 = vmatprep.subr.mxu0 0.0
        %567 = vmatpush1.msra.mxu0 0.0
        %568 = vmatprep.subr.mxu0 %v496
        %569 = vmatpush1.msra.mxu0 %v495
        %570 = vmatprep.subr.mxu0 %v492
        %571 = vmatpush1.msra.mxu0 %v491
        %572 = vmatprep.subr.mxu0 %v488
        %573 = vmatpush1.msra.mxu0 %v487
        %574 = vmatprep.subr.mxu0 %v484
        %575 = vmatpush1.msra.mxu0 %v483
        %576 = vmatprep.subr.mxu0 0.0
        %577 = vmatpush2.msra.mxu0 0.0
        %578 = vmatprep.subr.mxu0 0.0
        %579 = vmatpush2.msra.mxu0 0.0
        %580 = vmatprep.subr.mxu0 0.0
        %581 = vmatpush2.msra.mxu0 0.0
        %582 = vmatprep.subr.mxu0 0.0
        %583 = vmatpush2.msra.mxu0 0.0
        %584 = vmatprep.subr.mxu0 0.0
        %585 = vmatpush2.msra.mxu0 0.0
        %586 = vmatprep.subr.mxu0 0.0
        %587 = vmatpush2.msra.mxu0 0.0
        %588 = vmatprep.subr.mxu0 0.0
        %589 = vmatpush2.msra.mxu0 0.0
        %590 = vmatprep.subr.mxu0 0.0
        %591 = vmatpush2.msra.mxu0 0.0
        %592 = vmatprep.subr.mxu0 0.0
        %593 = vmatpush2.msra.mxu0 0.0
        %594 = vmatprep.subr.mxu0 0.0
        %595 = vmatpush2.msra.mxu0 0.0
        %596 = vmatprep.subr.mxu0 0.0
        %597 = vmatpush2.msra.mxu0 0.0
        %598 = vmatprep.subr.mxu0 0.0
        %599 = vmatpush2.msra.mxu0 0.0
        %600 = vmatprep.subr.mxu0 0.0
        %601 = vmatpush2.msra.mxu0 0.0
        %602 = vmatprep.subr.mxu0 0.0
        %603 = vmatpush2.msra.mxu0 0.0
        %604 = vmatprep.subr.mxu0 0.0
        %605 = vmatpush2.msra.mxu0 0.0
        %606 = vmatprep.subr.mxu0 0.0
        %607 = vmatpush2.msra.mxu0 0.0
        %608 = vmatprep.mubr.f32.mxu0 0.0
        %609 = vmatmul.mubr.f32.gmra.mxu0 %v533
        %v610 = vpop.f32.mrf.mxu0
        %v611 = vadd.f32 %v514, %v610
        %v612 = vpop.f32.mrf.mxu0
        %v613 = vadd.f32 %v514, %v612
        %614 = vmatprep.mubr.f32.mxu0 0.0
        %615 = vmatmul.mubr.f32.gmra.mxu0 %v536
        %v616 = vpop.f32.mrf.mxu0
        %v617 = vadd.f32 %v519, %v616
        %v618 = vpop.f32.mrf.mxu0
        %v619 = vadd.f32 %v519, %v618
        %620 = vmatprep.mubr.f32.mxu0 0.0
        %621 = vmatmul.mubr.f32.gmra.mxu0 %v539
        %v622 = vpop.f32.mrf.mxu0
        %v623 = vadd.f32 %v524, %v622
        %v624 = vpop.f32.mrf.mxu0
        %v625 = vadd.f32 %v524, %v624
        %626 = vmatprep.mubr.f32.mxu0 0.0
        %627 = vmatmul.mubr.f32.gmra.mxu0 %v542
        %v628 = vpop.f32.mrf.mxu0
        %v629 = vadd.f32 %v529, %v628
        %v630 = vpop.f32.mrf.mxu0
        %v631 = vadd.f32 %v529, %v630
        %632 = vdwg.mxu0
        %633 = vmatprep.subr.mxu0 0.0
        %634 = vmatpush1.msra.mxu0 0.0
        %635 = vmatprep.subr.mxu0 0.0
        %636 = vmatpush1.msra.mxu0 0.0
        %637 = vmatprep.subr.mxu0 0.0
        %638 = vmatpush1.msra.mxu0 0.0
        %639 = vmatprep.subr.mxu0 0.0
        %640 = vmatpush1.msra.mxu0 0.0
        %641 = vmatprep.subr.mxu0 0.0
        %642 = vmatpush1.msra.mxu0 0.0
        %643 = vmatprep.subr.mxu0 0.0
        %644 = vmatpush1.msra.mxu0 0.0
        %645 = vmatprep.subr.mxu0 0.0
        %646 = vmatpush1.msra.mxu0 0.0
        %647 = vmatprep.subr.mxu0 0.0
        %648 = vmatpush1.msra.mxu0 0.0
        %649 = vmatprep.subr.mxu0 0.0
        %650 = vmatpush1.msra.mxu0 0.0
        %651 = vmatprep.subr.mxu0 0.0
        %652 = vmatpush1.msra.mxu0 0.0
        %653 = vmatprep.subr.mxu0 0.0
        %654 = vmatpush1.msra.mxu0 0.0
        %655 = vmatprep.subr.mxu0 0.0
        %656 = vmatpush1.msra.mxu0 0.0
        %657 = vmatprep.subr.mxu0 %v498
        %658 = vmatpush1.msra.mxu0 %v497
        %659 = vmatprep.subr.mxu0 %v494
        %660 = vmatpush1.msra.mxu0 %v493
        %661 = vmatprep.subr.mxu0 %v490
        %662 = vmatpush1.msra.mxu0 %v489
        %663 = vmatprep.subr.mxu0 %v486
        %664 = vmatpush1.msra.mxu0 %v485
        %665 = vmatprep.subr.mxu0 0.0
        %666 = vmatpush2.msra.mxu0 0.0
        %667 = vmatprep.subr.mxu0 0.0
        %668 = vmatpush2.msra.mxu0 0.0
        %669 = vmatprep.subr.mxu0 0.0
        %670 = vmatpush2.msra.mxu0 0.0
        %671 = vmatprep.subr.mxu0 0.0
        %672 = vmatpush2.msra.mxu0 0.0
        %673 = vmatprep.subr.mxu0 0.0
        %674 = vmatpush2.msra.mxu0 0.0
        %675 = vmatprep.subr.mxu0 0.0
        %676 = vmatpush2.msra.mxu0 0.0
        %677 = vmatprep.subr.mxu0 0.0
        %678 = vmatpush2.msra.mxu0 0.0
        %679 = vmatprep.subr.mxu0 0.0
        %680 = vmatpush2.msra.mxu0 0.0
        %681 = vmatprep.subr.mxu0 0.0
        %682 = vmatpush2.msra.mxu0 0.0
        %683 = vmatprep.subr.mxu0 0.0
        %684 = vmatpush2.msra.mxu0 0.0
        %685 = vmatprep.subr.mxu0 0.0
        %686 = vmatpush2.msra.mxu0 0.0
        %687 = vmatprep.subr.mxu0 0.0
        %688 = vmatpush2.msra.mxu0 0.0
        %689 = vmatprep.subr.mxu0 0.0
        %690 = vmatpush2.msra.mxu0 0.0
        %691 = vmatprep.subr.mxu0 0.0
        %692 = vmatpush2.msra.mxu0 0.0
        %693 = vmatprep.subr.mxu0 0.0
        %694 = vmatpush2.msra.mxu0 0.0
        %695 = vmatprep.subr.mxu0 0.0
        %696 = vmatpush2.msra.mxu0 0.0
        %697 = vmatprep.mubr.f32.mxu0 0.0
        %698 = vmatmul.mubr.f32.gmra.mxu0 %v533
        %v699 = vpop.f32.mrf.mxu0
        %v700 = vadd.f32 %v514, %v699
        %v701 = vpop.f32.mrf.mxu0
        %v702 = vadd.f32 %v514, %v701
        %703 = vmatprep.mubr.f32.mxu0 0.0
        %704 = vmatmul.mubr.f32.gmra.mxu0 %v536
        %v705 = vpop.f32.mrf.mxu0
        %v706 = vadd.f32 %v519, %v705
        %v707 = vpop.f32.mrf.mxu0
        %v708 = vadd.f32 %v519, %v707
        %709 = vmatprep.mubr.f32.mxu0 0.0
        %710 = vmatmul.mubr.f32.gmra.mxu0 %v539
        %v711 = vpop.f32.mrf.mxu0
        %v712 = vadd.f32 %v524, %v711
        %v713 = vpop.f32.mrf.mxu0
        %v714 = vadd.f32 %v524, %v713
        %715 = vmatprep.mubr.f32.mxu0 0.0
        %716 = vmatmul.mubr.f32.gmra.mxu0 %v542
        %v717 = vpop.f32.mrf.mxu0
        %v718 = vadd.f32 %v529, %v717
        %v719 = vpop.f32.mrf.mxu0
        %v720 = vadd.f32 %v529, %v719
        %721 = vdwg.mxu0
        %v722 = vmax.f32 %v611, 0.0
        %v723 = vmax.f32 %v613, 0.0
        %v724 = vmax.f32 %v700, 0.0
        %v725 = vmax.f32 %v702, 0.0
        %v726 = vmax.f32 %v617, 0.0
        %v727 = vmax.f32 %v619, 0.0
        %v728 = vmax.f32 %v706, 0.0
        %v729 = vmax.f32 %v708, 0.0
        %v730 = vmax.f32 %v623, 0.0
        %v731 = vmax.f32 %v625, 0.0
        %v732 = vmax.f32 %v712, 0.0
        %v733 = vmax.f32 %v714, 0.0
        %v734 = vmax.f32 %v629, 0.0
        %v735 = vmax.f32 %v631, 0.0
        %v736 = vmax.f32 %v718, 0.0
        %v737 = vmax.f32 %v720, 0.0
        %v738 = vld [vmem:[%s5] sm:$0x1]
        %v739 = vunpack.c.l.bf16 %v738
        %v740 = vld [vmem:[#allocation2] sm:$0x1]
        %742 = vset.pattern.permute.xlu0 0
        %743 = vperm.xlu0 %742, %v740
        %v744 = vpop.permute.xlu0 %743
        %v746 = vlaneseq
        %v747 = vshrl.u32 %v746, 7
        %v748 = vsub.s32 0, %v747
        %v749 = vrot.slane %v744, %v748
        %v751 = vsel %vm531, %v739, 0
        %753 = vmatprep.subr.mxu0 0.0
        %754 = vmatpush1.msra.mxu0 0.0
        %755 = vmatprep.subr.mxu0 0.0
        %756 = vmatpush1.msra.mxu0 0.0
        %757 = vmatprep.subr.mxu0 0.0
        %758 = vmatpush1.msra.mxu0 0.0
        %759 = vmatprep.subr.mxu0 0.0
        %760 = vmatpush1.msra.mxu0 0.0
        %761 = vmatprep.subr.mxu0 0.0
        %762 = vmatpush1.msra.mxu0 0.0
        %763 = vmatprep.subr.mxu0 0.0
        %764 = vmatpush1.msra.mxu0 0.0
        %765 = vmatprep.subr.mxu0 0.0
        %766 = vmatpush1.msra.mxu0 0.0
        %767 = vmatprep.subr.mxu0 0.0
        %768 = vmatpush1.msra.mxu0 0.0
        %769 = vmatprep.subr.mxu0 0.0
        %770 = vmatpush1.msra.mxu0 0.0
        %771 = vmatprep.subr.mxu0 0.0
        %772 = vmatpush1.msra.mxu0 0.0
        %773 = vmatprep.subr.mxu0 0.0
        %774 = vmatpush1.msra.mxu0 0.0
        %775 = vmatprep.subr.mxu0 0.0
        %776 = vmatpush1.msra.mxu0 0.0
        %777 = vmatprep.subr.mxu0 %v735
        %778 = vmatpush1.msra.mxu0 %v734
        %779 = vmatprep.subr.mxu0 %v731
        %780 = vmatpush1.msra.mxu0 %v730
        %781 = vmatprep.subr.mxu0 %v727
        %782 = vmatpush1.msra.mxu0 %v726
        %783 = vmatprep.subr.mxu0 %v723
        %784 = vmatpush1.msra.mxu0 %v722
        %785 = vmatprep.subr.mxu0 0.0
        %786 = vmatpush2.msra.mxu0 0.0
        %787 = vmatprep.subr.mxu0 0.0
        %788 = vmatpush2.msra.mxu0 0.0
        %789 = vmatprep.subr.mxu0 0.0
        %790 = vmatpush2.msra.mxu0 0.0
        %791 = vmatprep.subr.mxu0 0.0
        %792 = vmatpush2.msra.mxu0 0.0
        %793 = vmatprep.subr.mxu0 0.0
        %794 = vmatpush2.msra.mxu0 0.0
        %795 = vmatprep.subr.mxu0 0.0
        %796 = vmatpush2.msra.mxu0 0.0
        %797 = vmatprep.subr.mxu0 0.0
        %798 = vmatpush2.msra.mxu0 0.0
        %799 = vmatprep.subr.mxu0 0.0
        %800 = vmatpush2.msra.mxu0 0.0
        %801 = vmatprep.subr.mxu0 0.0
        %802 = vmatpush2.msra.mxu0 0.0
        %803 = vmatprep.subr.mxu0 0.0
        %804 = vmatpush2.msra.mxu0 0.0
        %805 = vmatprep.subr.mxu0 0.0
        %806 = vmatpush2.msra.mxu0 0.0
        %807 = vmatprep.subr.mxu0 0.0
        %808 = vmatpush2.msra.mxu0 0.0
        %809 = vmatprep.subr.mxu0 0.0
        %810 = vmatpush2.msra.mxu0 0.0
        %811 = vmatprep.subr.mxu0 0.0
        %812 = vmatpush2.msra.mxu0 0.0
        %813 = vmatprep.subr.mxu0 0.0
        %814 = vmatpush2.msra.mxu0 0.0
        %815 = vmatprep.subr.mxu0 0.0
        %816 = vmatpush2.msra.mxu0 0.0
        %817 = vmatprep.mubr.f32.mxu0 0.0
        %818 = vmatmul.mubr.f32.gmra.mxu0 %v751
        %v819 = vpop.f32.mrf.mxu0
        %v820 = vadd.f32 %v749, %v819
        %v821 = vpop.f32.mrf.mxu0
        %v822 = vadd.f32 %v749, %v821
        %823 = vdwg.mxu0
        %824 = vmatprep.subr.mxu0 0.0
        %825 = vmatpush1.msra.mxu0 0.0
        %826 = vmatprep.subr.mxu0 0.0
        %827 = vmatpush1.msra.mxu0 0.0
        %828 = vmatprep.subr.mxu0 0.0
        %829 = vmatpush1.msra.mxu0 0.0
        %830 = vmatprep.subr.mxu0 0.0
        %831 = vmatpush1.msra.mxu0 0.0
        %832 = vmatprep.subr.mxu0 0.0
        %833 = vmatpush1.msra.mxu0 0.0
        %834 = vmatprep.subr.mxu0 0.0
        %835 = vmatpush1.msra.mxu0 0.0
        %836 = vmatprep.subr.mxu0 0.0
        %837 = vmatpush1.msra.mxu0 0.0
        %838 = vmatprep.subr.mxu0 0.0
        %839 = vmatpush1.msra.mxu0 0.0
        %840 = vmatprep.subr.mxu0 0.0
        %841 = vmatpush1.msra.mxu0 0.0
        %842 = vmatprep.subr.mxu0 0.0
        %843 = vmatpush1.msra.mxu0 0.0
        %844 = vmatprep.subr.mxu0 0.0
        %845 = vmatpush1.msra.mxu0 0.0
        %846 = vmatprep.subr.mxu0 0.0
        %847 = vmatpush1.msra.mxu0 0.0
        %848 = vmatprep.subr.mxu0 %v737
        %849 = vmatpush1.msra.mxu0 %v736
        %850 = vmatprep.subr.mxu0 %v733
        %851 = vmatpush1.msra.mxu0 %v732
        %852 = vmatprep.subr.mxu0 %v729
        %853 = vmatpush1.msra.mxu0 %v728
        %854 = vmatprep.subr.mxu0 %v725
        %855 = vmatpush1.msra.mxu0 %v724
        %856 = vmatprep.subr.mxu0 0.0
        %857 = vmatpush2.msra.mxu0 0.0
        %858 = vmatprep.subr.mxu0 0.0
        %859 = vmatpush2.msra.mxu0 0.0
        %860 = vmatprep.subr.mxu0 0.0
        %861 = vmatpush2.msra.mxu0 0.0
        %862 = vmatprep.subr.mxu0 0.0
        %863 = vmatpush2.msra.mxu0 0.0
        %864 = vmatprep.subr.mxu0 0.0
        %865 = vmatpush2.msra.mxu0 0.0
        %866 = vmatprep.subr.mxu0 0.0
        %867 = vmatpush2.msra.mxu0 0.0
        %868 = vmatprep.subr.mxu0 0.0
        %869 = vmatpush2.msra.mxu0 0.0
        %870 = vmatprep.subr.mxu0 0.0
        %871 = vmatpush2.msra.mxu0 0.0
        %872 = vmatprep.subr.mxu0 0.0
        %873 = vmatpush2.msra.mxu0 0.0
        %874 = vmatprep.subr.mxu0 0.0
        %875 = vmatpush2.msra.mxu0 0.0
        %876 = vmatprep.subr.mxu0 0.0
        %877 = vmatpush2.msra.mxu0 0.0
        %878 = vmatprep.subr.mxu0 0.0
        %879 = vmatpush2.msra.mxu0 0.0
        %880 = vmatprep.subr.mxu0 0.0
        %881 = vmatpush2.msra.mxu0 0.0
        %882 = vmatprep.subr.mxu0 0.0
        %883 = vmatpush2.msra.mxu0 0.0
        %884 = vmatprep.subr.mxu0 0.0
        %885 = vmatpush2.msra.mxu0 0.0
        %886 = vmatprep.subr.mxu0 0.0
        %887 = vmatpush2.msra.mxu0 0.0
        %888 = vmatprep.mubr.f32.mxu0 0.0
        %889 = vmatmul.mubr.f32.gmra.mxu0 %v751
        %v890 = vpop.f32.mrf.mxu0
        %v891 = vadd.f32 %v749, %v890
        %v892 = vpop.f32.mrf.mxu0
        %v893 = vadd.f32 %v749, %v892
        %894 = vdwg.mxu0
        %v899 = vcombine.low %v820, %v822
        %v900 = vcombine.low %v891, %v893
        %v902 = vunpack.c.l.s4 1966171168
        %v903 = vunpack.c.0.s8 %v902
        %v904 = vlaneseq
        %v905 = vshrl.u32 %v904, 7
        %v906 = vsub.s32 %v903, %v905
        %v907 = vrot.slane %v899, %v906
        %v909 = vunpack.c.l.s4 1966171168
        %v910 = vunpack.c.0.s8 %v909
        %v911 = vlaneseq
        %v912 = vshrl.u32 %v911, 7
        %v913 = vsub.s32 %v910, %v912
        %v914 = vrot.slane %v900, %v913
        %v915 = vcombine.low %v907, %v914
        %v917 = vunpack.c.l.s4 1966171168
        %v918 = vunpack.c.0.s8 %v917
        %v919 = vlaneseq
        %v920 = vshrl.u32 %v919, 7
        %v921 = vsub.s32 %v918, %v920
        %v922 = vrot.slane %v915, %v921
        %v924 = vlaneseq
        %vm925 = vcmp.ge.s32.totalorder %v924, 0
        %vm926 = vcmp.lt.s32.totalorder %v924, 512
        %vm927 = vmand %vm925, %vm926
        %928 = vst.msk [vmem:[%s304] sm:$0xf] %vm927, %v922
        %s929 = sand.u32 %s183, 1
        %s930 = scalar_lea.sflag [#allocation5], %s929
        %s931 = sand.u32 %s183, 1
        %s932 = smul.addr %s931, 4
        %s933 = scalar_lea.vmem [#allocation4], %s932
        // Predicated region
        $region72: #{tpu_custom_call.1} parent=66 // pred_check
          %p934 = pneg %p193
        $region73: #{tpu_custom_call.1} parent=66 // pred_check_branch
          %936 = sbr.rel (%p934) target = $region75
        $region74: #{tpu_custom_call.1} parent=66 // pred_region
          %s937 = smul.u32 4, %s23
          %s939 = ssub.s32 64, 64
          %940 = vsyncadd %s930, %s939
          %s941 = smul.addr %s937, 16
          %s942 = scalar_lea.hbm %s7, %s941
          %s944 = sshll.u32 %s933, 4
          %s945 = int_to_ptr.vmem [resolvable:$true] %s944
          %947 = dma.vmem_to_hbm [thread:$0]  %s945, 64, %s942, %s930
        $region75: #{tpu_custom_call.1} parent=66 // pred_fallthru
          _
      $region67: #{tpu_custom_call.1} parent=5 // pred_fallthru
        _
      %p948 = scmp.le.s32.totalorder 2, %s18
      // Predicated region
      $region76: #{tpu_custom_call.1} parent=5 // pred_check
        %p949 = pneg %p948
      $region77: #{tpu_custom_call.1} parent=5 // pred_check_branch
        %951 = sbr.rel (%p949) target = $region79
      $region78: #{tpu_custom_call.1} parent=5 // pred_region
        %s952 = ssub.s32 %s18, 2
        // Predicated region
        $region80: #{tpu_custom_call.1} parent=78 // pred_check
          %p953 = pneg %p199
        $region81: #{tpu_custom_call.1} parent=78 // pred_check_branch
          %955 = sbr.rel (%p953) target = $region83
        $region82: #{tpu_custom_call.1} parent=78 // pred_region
          %s956 = sand.u32 %s184, 1
          %s957 = scalar_lea.sflag [#allocation5], %s956
          %s958 = sand.u32 %s184, 1
          %s959 = smul.addr %s958, 4
          %s960 = scalar_lea.vmem [#allocation4], %s959
          %961 = dma.done %s957, 64
        $region83: #{tpu_custom_call.1} parent=78 // pred_fallthru
          _
      $region79: #{tpu_custom_call.1} parent=5 // pred_fallthru
        _
    $region6: #{tpu_custom_call.1} parent=1 // loop_footer
      %s22 = sadd.s32 1, %s18
    $region7: #{tpu_custom_call.1} parent=1 // loop_footer_branch
      %17 = sbr.rel target = $region3
    $region8: #{tpu_custom_call.1} parent=1 // loop_exit
      _
    %962 = vsyncpa [#allocation5], 1
    %s963 = scalar_lea.sflag [#allocation5], 1
    %964 = vsyncpa %s963, 1

</llo_original>
